<compile_context>
chip_gen: v7x
topology: tpu7x:2x2x1
jax: 0.10.0
libtpu: 0.0.40
codegen_flags: <defaults>
</compile_context>

<pallas_src>
import functools
import math

import jax
import jax.numpy as jnp
from jax.experimental import pallas as pl
from jax.experimental.pallas import tpu as pltpu

FFT_SIZE = 32
HOP = 2
WIN_LEN = 8
N_FREQ = FFT_SIZE // 2 + 1          # onesided spectrum: 17
N_TAP_PAIRS = FFT_SIZE // HOP       # 16 even/odd tap pairs
DEFAULT_TILE_FRAMES = 2048          # frames per grid step (multiple of 128)


def _hann_window_padded():
    # torch.hann_window(win_length) is periodic; torch.stft centers it in n_fft.
    n = jnp.arange(WIN_LEN, dtype=jnp.float32)
    hann = 0.5 - 0.5 * jnp.cos(2.0 * math.pi * n / WIN_LEN)
    lpad = (FFT_SIZE - WIN_LEN) // 2
    return jnp.zeros((FFT_SIZE,), jnp.float32).at[lpad:lpad + WIN_LEN].set(hann)


def _dft_matrix_stacked():
    # (2*N_FREQ, FFT_SIZE): rows 0..16 -> real basis, rows 17..33 -> imag basis.
    win = _hann_window_padded()
    k = jnp.arange(N_FREQ, dtype=jnp.float32)[:, None]
    nn = jnp.arange(FFT_SIZE, dtype=jnp.float32)[None, :]
    ang = 2.0 * math.pi * k * nn / FFT_SIZE
    w_real = jnp.cos(ang) * win[None, :]
    w_imag = -jnp.sin(ang) * win[None, :]
    return jnp.concatenate([w_real, w_imag], axis=0).astype(jnp.float32)


def _stft_kernel(chunk_ref, w_ref, out_ref, f_ref, *, tile_frames):
    # chunk_ref: (2, tile_frames + 16)   even/odd polyphase samples of this tile
    # w_ref:     (2*N_FREQ, FFT_SIZE)    stacked window-folded DFT matrix
    # out_ref:   (2*N_FREQ, tile_frames) fused real+imag output tile
    # f_ref:     (FFT_SIZE, tile_frames) VMEM scratch holding the frame matrix
    #
    # Frame N (local), tap k = 2q + r:  xp[2N + k] = chunk[r, N + q]
    for q in range(N_TAP_PAIRS):
        f_ref[2 * q:2 * q + 2, :] = chunk_ref[:, q:q + tile_frames]
    out_ref[...] = jnp.dot(w_ref[...], f_ref[...],
                           preferred_element_type=jnp.float32)


def freq_split(x, tile_frames=DEFAULT_TILE_FRAMES):
    """Pallas implementation of FreqSplit.forward; returns (real, imag)."""
    B, T = x.shape
    pad = FFT_SIZE // 2
    assert T > pad, "center=True reflect padding needs T > fft_size // 2"

    # center=True reflect padding (torch.stft default pad_mode='reflect').
    xp = jnp.pad(x, ((0, 0), (pad, pad)), mode="reflect").astype(jnp.float32)
    n_frames = 1 + (xp.shape[1] - FFT_SIZE) // HOP

    # Lane-dense frame tiling: TF is a multiple of 128.
    tf = min(tile_frames, pl.cdiv(n_frames, 128) * 128)
    tf = max(128, 128 * (tf // 128))
    n_tiles = pl.cdiv(n_frames, tf)
    n_frames_pad = n_tiles * tf
    ce = tf + N_TAP_PAIRS                       # chunk columns per parity

    # Even/odd polyphase split; zero-pad so every tile's chunk is in range.
    tgt = n_frames_pad + N_TAP_PAIRS
    xe = xp[:, 0::2]
    xo = xp[:, 1::2]
    xe = jnp.pad(xe, ((0, 0), (0, tgt - xe.shape[1])))
    xo = jnp.pad(xo, ((0, 0), (0, tgt - xo.shape[1])))

    # Per-tile overlapping chunks, (B*n_tiles, 2, ce): ~1.0x the waveform
    # (vs. the 16x blow-up of materializing all overlapping frames in HBM).
    col = jnp.arange(n_tiles)[:, None] * tf + jnp.arange(ce)[None, :]
    chunks = jnp.stack([xe[:, col], xo[:, col]], axis=2)        # (B, n_tiles, 2, ce)
    chunks = chunks.reshape(B * n_tiles, 2, ce)

    w = _dft_matrix_stacked()                                   # (34, 32)

    kernel = functools.partial(_stft_kernel, tile_frames=tf)
    flops = 2 * B * (2 * N_FREQ) * FFT_SIZE * n_frames_pad
    bytes_accessed = (chunks.size + w.size + B * 2 * N_FREQ * n_frames_pad) * 4

    out = pl.pallas_call(
        kernel,
        out_shape=jax.ShapeDtypeStruct((B, 2 * N_FREQ, n_frames_pad), jnp.float32),
        grid=(B, n_tiles),
        in_specs=[
            pl.BlockSpec((None, 2, ce), lambda b, j: (b * n_tiles + j, 0, 0)),
            pl.BlockSpec((2 * N_FREQ, FFT_SIZE), lambda b, j: (0, 0)),
        ],
        out_specs=pl.BlockSpec((None, 2 * N_FREQ, tf), lambda b, j: (b, 0, j)),
        scratch_shapes=[pltpu.VMEM((FFT_SIZE, tf), jnp.float32)],
        compiler_params=pltpu.CompilerParams(
            dimension_semantics=("parallel", "parallel")),
        cost_estimate=pl.CostEstimate(
            flops=flops, transcendentals=0, bytes_accessed=bytes_accessed),
    )(chunks, w)

    real = out[:, :N_FREQ, :n_frames]
    imag = out[:, N_FREQ:, :n_frames]
    return real, imag


def _reference(x):
    """Pure-JAX reference (same torch.stft semantics) for a sanity check."""
    pad = FFT_SIZE // 2
    xp = jnp.pad(x, ((0, 0), (pad, pad)), mode="reflect")
    n_frames = 1 + (xp.shape[1] - FFT_SIZE) // HOP
    idx = jnp.arange(n_frames)[:, None] * HOP + jnp.arange(FFT_SIZE)[None, :]
    win = _hann_window_padded()
    spec = jnp.fft.rfft(xp[:, idx] * win[None, None, :], axis=-1)  # (B, n_frames, n_freq)
    return (jnp.transpose(spec.real, (0, 2, 1)),
            jnp.transpose(spec.imag, (0, 2, 1)))


if __name__ == "__main__":
    key = jax.random.PRNGKey(0)
    k1, k2 = jax.random.split(key)

    # Case 1: small default (single frame tile).
    x = jax.random.normal(k1, (2, 64), dtype=jnp.float32)       # (batch, time)
    real, imag = jax.jit(freq_split)(x)
    jax.block_until_ready((real, imag))
    ref_real, ref_imag = _reference(x)
    assert real.shape == (2, N_FREQ, 1 + 64 // HOP)
    assert imag.shape == (2, N_FREQ, 1 + 64 // HOP)
    assert jnp.allclose(real, ref_real, atol=2e-3), "real mismatch"
    assert jnp.allclose(imag, ref_imag, atol=2e-3), "imag mismatch"

    # Case 2: exercise the multi-tile frame grid (tile_frames=128 -> 2 tiles).
    x2 = jax.random.normal(k2, (1, 300), dtype=jnp.float32)
    real2, imag2 = jax.jit(functools.partial(freq_split, tile_frames=128))(x2)
    jax.block_until_ready((real2, imag2))
    ref_real2, ref_imag2 = _reference(x2)
    assert real2.shape == (1, N_FREQ, 1 + 300 // HOP)
    assert jnp.allclose(real2, ref_real2, atol=2e-3), "real mismatch (tiled)"
    assert jnp.allclose(imag2, ref_imag2, atol=2e-3), "imag mismatch (tiled)"

    print("KERNEL_OK")
</pallas_src>

<mosaic_0001>
module attributes {stable_mosaic.version = 11 : i64} {
  func.func @_stft_kernel(%arg0: i32, %arg1: i32, %arg2: memref<1x2x144xf32, #tpu.memory_space<vmem>>, %arg3: memref<34x32xf32, #tpu.memory_space<vmem>>, %arg4: memref<1x34x128xf32, #tpu.memory_space<vmem>>, %arg5: memref<32x128xf32, #tpu.memory_space<vmem>>) attributes {dimension_semantics = [#tpu.dimension_semantics<parallel>, #tpu.dimension_semantics<parallel>], iteration_bounds = array<i64: 2, 1>, scalar_prefetch = 0 : i64, scratch_operands = 1 : i64, tpu.core_type = #tpu.core_type<tc>, window_params = [{transform_indices = @transform_0, window_bounds = array<i64: 1, 2, 144>}, {pipeline_mode = #tpu.pipeline_mode<synchronous>, transform_indices = @transform_1, window_bounds = array<i64: 34, 32>}, {transform_indices = @transform_2, window_bounds = array<i64: 1, 34, 128>}]} {
    %c0 = arith.constant 0 : index
    %c0_0 = arith.constant 0 : index
    %c0_1 = arith.constant 0 : index
    %0 = vector.load %arg2[%c0, %c0_0, %c0_1] : memref<1x2x144xf32, #tpu.memory_space<vmem>>, vector<1x2x128xf32>
    %1 = vector.shape_cast %0 : vector<1x2x128xf32> to vector<2x128xf32>
    %c0_2 = arith.constant 0 : index
    %c0_3 = arith.constant 0 : index
    %2 = vector.load %arg5[%c0_2, %c0_3] : memref<32x128xf32, #tpu.memory_space<vmem>>, vector<2x128xf32>
    tpu.vector_store %arg5[%c0_2, %c0_3], %1 {strides = array<i32>} : memref<32x128xf32, #tpu.memory_space<vmem>>, vector<2x128xf32>,
    %c0_4 = arith.constant 0 : index
    %c0_5 = arith.constant 0 : index
    %c1 = arith.constant 1 : index
    %3 = vector.load %arg2[%c0_4, %c0_5, %c1] : memref<1x2x144xf32, #tpu.memory_space<vmem>>, vector<1x2x128xf32>
    %4 = vector.shape_cast %3 : vector<1x2x128xf32> to vector<2x128xf32>
    %c2 = arith.constant 2 : index
    %c0_6 = arith.constant 0 : index
    %5 = vector.load %arg5[%c2, %c0_6] : memref<32x128xf32, #tpu.memory_space<vmem>>, vector<2x128xf32>
    tpu.vector_store %arg5[%c2, %c0_6], %4 {strides = array<i32>} : memref<32x128xf32, #tpu.memory_space<vmem>>, vector<2x128xf32>,
    %c0_7 = arith.constant 0 : index
    %c0_8 = arith.constant 0 : index
    %c2_9 = arith.constant 2 : index
    %6 = vector.load %arg2[%c0_7, %c0_8, %c2_9] : memref<1x2x144xf32, #tpu.memory_space<vmem>>, vector<1x2x128xf32>
    %7 = vector.shape_cast %6 : vector<1x2x128xf32> to vector<2x128xf32>
    %c4 = arith.constant 4 : index
    %c0_10 = arith.constant 0 : index
    %8 = vector.load %arg5[%c4, %c0_10] : memref<32x128xf32, #tpu.memory_space<vmem>>, vector<2x128xf32>
    tpu.vector_store %arg5[%c4, %c0_10], %7 {strides = array<i32>} : memref<32x128xf32, #tpu.memory_space<vmem>>, vector<2x128xf32>,
    %c0_11 = arith.constant 0 : index
    %c0_12 = arith.constant 0 : index
    %c3 = arith.constant 3 : index
    %9 = vector.load %arg2[%c0_11, %c0_12, %c3] : memref<1x2x144xf32, #tpu.memory_space<vmem>>, vector<1x2x128xf32>
    %10 = vector.shape_cast %9 : vector<1x2x128xf32> to vector<2x128xf32>
    %c6 = arith.constant 6 : index
    %c0_13 = arith.constant 0 : index
    %11 = vector.load %arg5[%c6, %c0_13] : memref<32x128xf32, #tpu.memory_space<vmem>>, vector<2x128xf32>
    tpu.vector_store %arg5[%c6, %c0_13], %10 {strides = array<i32>} : memref<32x128xf32, #tpu.memory_space<vmem>>, vector<2x128xf32>,
    %c0_14 = arith.constant 0 : index
    %c0_15 = arith.constant 0 : index
    %c4_16 = arith.constant 4 : index
    %12 = vector.load %arg2[%c0_14, %c0_15, %c4_16] : memref<1x2x144xf32, #tpu.memory_space<vmem>>, vector<1x2x128xf32>
    %13 = vector.shape_cast %12 : vector<1x2x128xf32> to vector<2x128xf32>
    %c8 = arith.constant 8 : index
    %c0_17 = arith.constant 0 : index
    %14 = vector.load %arg5[%c8, %c0_17] : memref<32x128xf32, #tpu.memory_space<vmem>>, vector<2x128xf32>
    tpu.vector_store %arg5[%c8, %c0_17], %13 {strides = array<i32>} : memref<32x128xf32, #tpu.memory_space<vmem>>, vector<2x128xf32>,
    %c0_18 = arith.constant 0 : index
    %c0_19 = arith.constant 0 : index
    %c5 = arith.constant 5 : index
    %15 = vector.load %arg2[%c0_18, %c0_19, %c5] : memref<1x2x144xf32, #tpu.memory_space<vmem>>, vector<1x2x128xf32>
    %16 = vector.shape_cast %15 : vector<1x2x128xf32> to vector<2x128xf32>
    %c10 = arith.constant 10 : index
    %c0_20 = arith.constant 0 : index
    %17 = vector.load %arg5[%c10, %c0_20] : memref<32x128xf32, #tpu.memory_space<vmem>>, vector<2x128xf32>
    tpu.vector_store %arg5[%c10, %c0_20], %16 {strides = array<i32>} : memref<32x128xf32, #tpu.memory_space<vmem>>, vector<2x128xf32>,
    %c0_21 = arith.constant 0 : index
    %c0_22 = arith.constant 0 : index
    %c6_23 = arith.constant 6 : index
    %18 = vector.load %arg2[%c0_21, %c0_22, %c6_23] : memref<1x2x144xf32, #tpu.memory_space<vmem>>, vector<1x2x128xf32>
    %19 = vector.shape_cast %18 : vector<1x2x128xf32> to vector<2x128xf32>
    %c12 = arith.constant 12 : index
    %c0_24 = arith.constant 0 : index
    %20 = vector.load %arg5[%c12, %c0_24] : memref<32x128xf32, #tpu.memory_space<vmem>>, vector<2x128xf32>
    tpu.vector_store %arg5[%c12, %c0_24], %19 {strides = array<i32>} : memref<32x128xf32, #tpu.memory_space<vmem>>, vector<2x128xf32>,
    %c0_25 = arith.constant 0 : index
    %c0_26 = arith.constant 0 : index
    %c7 = arith.constant 7 : index
    %21 = vector.load %arg2[%c0_25, %c0_26, %c7] : memref<1x2x144xf32, #tpu.memory_space<vmem>>, vector<1x2x128xf32>
    %22 = vector.shape_cast %21 : vector<1x2x128xf32> to vector<2x128xf32>
    %c14 = arith.constant 14 : index
    %c0_27 = arith.constant 0 : index
    %23 = vector.load %arg5[%c14, %c0_27] : memref<32x128xf32, #tpu.memory_space<vmem>>, vector<2x128xf32>
    tpu.vector_store %arg5[%c14, %c0_27], %22 {strides = array<i32>} : memref<32x128xf32, #tpu.memory_space<vmem>>, vector<2x128xf32>,
    %c0_28 = arith.constant 0 : index
    %c0_29 = arith.constant 0 : index
    %c8_30 = arith.constant 8 : index
    %24 = vector.load %arg2[%c0_28, %c0_29, %c8_30] : memref<1x2x144xf32, #tpu.memory_space<vmem>>, vector<1x2x128xf32>
    %25 = vector.shape_cast %24 : vector<1x2x128xf32> to vector<2x128xf32>
    %c16 = arith.constant 16 : index
    %c0_31 = arith.constant 0 : index
    %26 = vector.load %arg5[%c16, %c0_31] : memref<32x128xf32, #tpu.memory_space<vmem>>, vector<2x128xf32>
    tpu.vector_store %arg5[%c16, %c0_31], %25 {strides = array<i32>} : memref<32x128xf32, #tpu.memory_space<vmem>>, vector<2x128xf32>,
    %c0_32 = arith.constant 0 : index
    %c0_33 = arith.constant 0 : index
    %c9 = arith.constant 9 : index
    %27 = vector.load %arg2[%c0_32, %c0_33, %c9] : memref<1x2x144xf32, #tpu.memory_space<vmem>>, vector<1x2x128xf32>
    %28 = vector.shape_cast %27 : vector<1x2x128xf32> to vector<2x128xf32>
    %c18 = arith.constant 18 : index
    %c0_34 = arith.constant 0 : index
    %29 = vector.load %arg5[%c18, %c0_34] : memref<32x128xf32, #tpu.memory_space<vmem>>, vector<2x128xf32>
    tpu.vector_store %arg5[%c18, %c0_34], %28 {strides = array<i32>} : memref<32x128xf32, #tpu.memory_space<vmem>>, vector<2x128xf32>,
    %c0_35 = arith.constant 0 : index
    %c0_36 = arith.constant 0 : index
    %c10_37 = arith.constant 10 : index
    %30 = vector.load %arg2[%c0_35, %c0_36, %c10_37] : memref<1x2x144xf32, #tpu.memory_space<vmem>>, vector<1x2x128xf32>
    %31 = vector.shape_cast %30 : vector<1x2x128xf32> to vector<2x128xf32>
    %c20 = arith.constant 20 : index
    %c0_38 = arith.constant 0 : index
    %32 = vector.load %arg5[%c20, %c0_38] : memref<32x128xf32, #tpu.memory_space<vmem>>, vector<2x128xf32>
    tpu.vector_store %arg5[%c20, %c0_38], %31 {strides = array<i32>} : memref<32x128xf32, #tpu.memory_space<vmem>>, vector<2x128xf32>,
    %c0_39 = arith.constant 0 : index
    %c0_40 = arith.constant 0 : index
    %c11 = arith.constant 11 : index
    %33 = vector.load %arg2[%c0_39, %c0_40, %c11] : memref<1x2x144xf32, #tpu.memory_space<vmem>>, vector<1x2x128xf32>
    %34 = vector.shape_cast %33 : vector<1x2x128xf32> to vector<2x128xf32>
    %c22 = arith.constant 22 : index
    %c0_41 = arith.constant 0 : index
    %35 = vector.load %arg5[%c22, %c0_41] : memref<32x128xf32, #tpu.memory_space<vmem>>, vector<2x128xf32>
    tpu.vector_store %arg5[%c22, %c0_41], %34 {strides = array<i32>} : memref<32x128xf32, #tpu.memory_space<vmem>>, vector<2x128xf32>,
    %c0_42 = arith.constant 0 : index
    %c0_43 = arith.constant 0 : index
    %c12_44 = arith.constant 12 : index
    %36 = vector.load %arg2[%c0_42, %c0_43, %c12_44] : memref<1x2x144xf32, #tpu.memory_space<vmem>>, vector<1x2x128xf32>
    %37 = vector.shape_cast %36 : vector<1x2x128xf32> to vector<2x128xf32>
    %c24 = arith.constant 24 : index
    %c0_45 = arith.constant 0 : index
    %38 = vector.load %arg5[%c24, %c0_45] : memref<32x128xf32, #tpu.memory_space<vmem>>, vector<2x128xf32>
    tpu.vector_store %arg5[%c24, %c0_45], %37 {strides = array<i32>} : memref<32x128xf32, #tpu.memory_space<vmem>>, vector<2x128xf32>,
    %c0_46 = arith.constant 0 : index
    %c0_47 = arith.constant 0 : index
    %c13 = arith.constant 13 : index
    %39 = vector.load %arg2[%c0_46, %c0_47, %c13] : memref<1x2x144xf32, #tpu.memory_space<vmem>>, vector<1x2x128xf32>
    %40 = vector.shape_cast %39 : vector<1x2x128xf32> to vector<2x128xf32>
    %c26 = arith.constant 26 : index
    %c0_48 = arith.constant 0 : index
    %41 = vector.load %arg5[%c26, %c0_48] : memref<32x128xf32, #tpu.memory_space<vmem>>, vector<2x128xf32>
    tpu.vector_store %arg5[%c26, %c0_48], %40 {strides = array<i32>} : memref<32x128xf32, #tpu.memory_space<vmem>>, vector<2x128xf32>,
    %c0_49 = arith.constant 0 : index
    %c0_50 = arith.constant 0 : index
    %c14_51 = arith.constant 14 : index
    %42 = vector.load %arg2[%c0_49, %c0_50, %c14_51] : memref<1x2x144xf32, #tpu.memory_space<vmem>>, vector<1x2x128xf32>
    %43 = vector.shape_cast %42 : vector<1x2x128xf32> to vector<2x128xf32>
    %c28 = arith.constant 28 : index
    %c0_52 = arith.constant 0 : index
    %44 = vector.load %arg5[%c28, %c0_52] : memref<32x128xf32, #tpu.memory_space<vmem>>, vector<2x128xf32>
    tpu.vector_store %arg5[%c28, %c0_52], %43 {strides = array<i32>} : memref<32x128xf32, #tpu.memory_space<vmem>>, vector<2x128xf32>,
    %c0_53 = arith.constant 0 : index
    %c0_54 = arith.constant 0 : index
    %c15 = arith.constant 15 : index
    %45 = vector.load %arg2[%c0_53, %c0_54, %c15] : memref<1x2x144xf32, #tpu.memory_space<vmem>>, vector<1x2x128xf32>
    %46 = vector.shape_cast %45 : vector<1x2x128xf32> to vector<2x128xf32>
    %c30 = arith.constant 30 : index
    %c0_55 = arith.constant 0 : index
    %47 = vector.load %arg5[%c30, %c0_55] : memref<32x128xf32, #tpu.memory_space<vmem>>, vector<2x128xf32>
    tpu.vector_store %arg5[%c30, %c0_55], %46 {strides = array<i32>} : memref<32x128xf32, #tpu.memory_space<vmem>>, vector<2x128xf32>,
    %c0_56 = arith.constant 0 : index
    %c0_57 = arith.constant 0 : index
    %48 = vector.load %arg3[%c0_56, %c0_57] : memref<34x32xf32, #tpu.memory_space<vmem>>, vector<34x32xf32>
    %c0_58 = arith.constant 0 : index
    %c0_59 = arith.constant 0 : index
    %49 = vector.load %arg5[%c0_58, %c0_59] : memref<32x128xf32, #tpu.memory_space<vmem>>, vector<32x128xf32>
    %cst = arith.constant dense<0.000000e+00> : vector<34x128xf32>
    %50 = tpu.matmul %48, %49, %cst {dimension_numbers = #tpu.dot_dimension_numbers<[1], [0], [0], [1], [0, 0, 1, 1], [], []>} : vector<34x32xf32>, vector<32x128xf32>, vector<34x128xf32> -> vector<34x128xf32>
    %c0_60 = arith.constant 0 : index
    %c0_61 = arith.constant 0 : index
    %c0_62 = arith.constant 0 : index
    %51 = vector.load %arg4[%c0_60, %c0_61, %c0_62] : memref<1x34x128xf32, #tpu.memory_space<vmem>>, vector<1x34x128xf32>
    %52 = vector.shape_cast %51 : vector<1x34x128xf32> to vector<34x128xf32>
    %53 = vector.shape_cast %50 : vector<34x128xf32> to vector<1x34x128xf32>
    tpu.vector_store %arg4[%c0_60, %c0_61, %c0_62], %53 {strides = array<i32>} : memref<1x34x128xf32, #tpu.memory_space<vmem>>, vector<1x34x128xf32>,
    return
  }
  func.func @transform_0(%arg0: i32, %arg1: i32) -> (i32, i32, i32) {
    %c1_i32 = arith.constant 1 : i32
    %0 = arith.muli %arg0, %c1_i32 : i32
    %1 = arith.addi %0, %arg1 : i32
    %c0_i32 = arith.constant 0 : i32
    %c0_i32_0 = arith.constant 0 : i32
    %c0_i32_1 = arith.constant 0 : i32
    return %1, %c0_i32, %c0_i32_0 : i32, i32, i32
  }
  func.func @transform_1(%arg0: i32, %arg1: i32) -> (i32, i32) {
    %c0_i32 = arith.constant 0 : i32
    %c0_i32_0 = arith.constant 0 : i32
    %c0_i32_1 = arith.constant 0 : i32
    return %c0_i32, %c0_i32_0 : i32, i32
  }
  func.func @transform_2(%arg0: i32, %arg1: i32) -> (i32, i32, i32) {
    %c0_i32 = arith.constant 0 : i32
    %c0_i32_0 = arith.constant 0 : i32
    return %arg0, %c0_i32, %arg1 : i32, i32, i32
  }
}

</mosaic_0001>

<llo_original>
// kernel: freq_split.1
$region0: #{freq_split.1}
  #allocation0 [shape = 'u32[]', space=smem, size = 0x4, offset = 0x4, fixed_abs, tag = 'smem constant byte address 0x4 - core index']
  #allocation1 [shape = 'u32[144,128]{1,0:T(1,128)}', space=vmem, size = 0x12000, scoped, tag = 'internal scratch']
  #allocation2 [shape = 'f32[32,128]{1,0:T(8,128)}', space=vmem, size = 0x4000, scoped, tag = 'scratch operand']
  %s0 = inlined_call_operand.vmem [shape: f32[2,2,144], index: 0, kind: input, shape index: {}]
  %s1 = inlined_call_operand.vmem [shape: f32[34,32], index: 1, kind: input, shape index: {}]
  %s2 = inlined_call_operand.vmem [shape: f32[2,34,128], index: 2, kind: output, shape index: {}]
  %s3 = sld [smem:[#allocation0]]
  $region41: #{freq_split.1} parent=0
    _
  %s5 = ssub.s32 1, %s3
  %s6 = scalar_select 0, %s5, %s3
  loop: start=0, step=1, limit=4
  $region2: #{freq_split.1} parent=0 // loop_pre_header
    _
  $region3: #{freq_split.1} parent=0 // loop_header
    %s8 = sphi 0, %s12
    %p9 = scmp.ge.s32.totalorder %s8, 4
    %s15 = sphi 0, %s27
    %s16 = sphi 0, %s23
    %s17 = sphi 0, %s15
    %s18 = sphi 0, %s16
    %s19 = sphi 0, %s17
    %s20 = sphi 0, %s18
    %s32 = sphi 0, %s34
    %s35 = sphi 0, %s32
    %s36 = sphi 0, %s35
    %s52 = sphi 0, %s36
    %s56 = sphi 0, %s56
    %s58 = sphi 0, %s56
    %s59 = sphi 0, %s58
    %s73 = sphi 0, %s59
    %s81 = sphi 0, %s83
    %s84 = sphi 0, %s81
    %s85 = sphi 0, %s84
    %s101 = sphi 0, %s85
  $region4: #{freq_split.1} parent=0 // loop_header_branch
    %11 = sbr.rel (%p9) target = $region8
  $region5: #{freq_split.1} parent=0 // loop_body
    %s13 = ssub.s32 %s8, 1
    %s14 = ssub.s32 %s8, 2
    %s21 = sadd.s32 1, %s16
    %p22 = scmp.ge.s32.totalorder %s21, 1
    %s23 = scalar_select %p22, 0, %s21
    %s24 = sadd.s32 1, %s15
    %s25 = scalar_select %p22, %s24, %s15
    %p26 = scmp.ge.s32.totalorder %s25, 2
    %s27 = scalar_select %p26, 0, %s25
    %s28 = sadd.s32 %s15, %s16
    %s29 = sadd.s32 %s27, %s23
    %s30 = ssub.s32 %s28, %s29
    %p31 = scmp.eq.s32.totalorder %s30, 0
    %s33 = sadd.s32 %s32, 1
    %s34 = scalar_select %p31, %s32, %s33
    %p37 = pneg %p31
    %p38 = scmp.eq.s32.totalorder %s8, 1
    %p39 = por %p37, %p38
    %p40 = scmp.ne.s32.totalorder %s32, %s35
    %p41 = scmp.eq.s32.totalorder %s8, 0
    %p42 = por %p40, %p41
    %p43 = scmp.ne.s32.totalorder %s32, %s35
    %p44 = scmp.eq.s32.totalorder %s13, 1
    %p45 = por %p43, %p44
    %p46 = scmp.ne.s32.totalorder %s35, %s36
    %p47 = scmp.eq.s32.totalorder %s13, 0
    %p48 = por %p46, %p47
    %p49 = scmp.ne.s32.totalorder %s35, %s36
    %p50 = scmp.eq.s32.totalorder %s14, 1
    %p51 = por %p49, %p50
    %p53 = scmp.ne.s32.totalorder %s36, %s52
    %p54 = scmp.eq.s32.totalorder %s14, 0
    %p55 = por %p53, %p54
    %s57 = sadd.s32 %s56, 1
    %p60 = scmp.eq.s32.totalorder %s8, 1
    %p61 = scmp.ne.s32.totalorder %s56, %s58
    %p62 = scmp.eq.s32.totalorder %s8, 0
    %p63 = por %p61, %p62
    %p64 = scmp.ne.s32.totalorder %s56, %s58
    %p65 = scmp.eq.s32.totalorder %s13, 1
    %p66 = por %p64, %p65
    %p67 = scmp.ne.s32.totalorder %s58, %s59
    %p68 = scmp.eq.s32.totalorder %s13, 0
    %p69 = por %p67, %p68
    %p70 = scmp.ne.s32.totalorder %s58, %s59
    %p71 = scmp.eq.s32.totalorder %s14, 1
    %p72 = por %p70, %p71
    %p74 = scmp.ne.s32.totalorder %s59, %s73
    %p75 = scmp.eq.s32.totalorder %s14, 0
    %p76 = por %p74, %p75
    %s77 = ssub.s32 %s15, %s27
    %s78 = ssub.s32 %s16, %s23
    %s79 = sor.u32 %s77, %s78
    %p80 = scmp.eq.s32.totalorder %s79, 0
    %s82 = sadd.s32 %s81, 1
    %s83 = scalar_select %p80, %s81, %s82
    %p86 = pneg %p80
    %p87 = scmp.eq.s32.totalorder %s8, 1
    %p88 = por %p86, %p87
    %p89 = scmp.ne.s32.totalorder %s81, %s84
    %p90 = scmp.eq.s32.totalorder %s8, 0
    %p91 = por %p89, %p90
    %p92 = scmp.ne.s32.totalorder %s81, %s84
    %p93 = scmp.eq.s32.totalorder %s13, 1
    %p94 = por %p92, %p93
    %p95 = scmp.ne.s32.totalorder %s84, %s85
    %p96 = scmp.eq.s32.totalorder %s13, 0
    %p97 = por %p95, %p96
    %p98 = scmp.ne.s32.totalorder %s84, %s85
    %p99 = scmp.eq.s32.totalorder %s14, 1
    %p100 = por %p98, %p99
    %p102 = scmp.ne.s32.totalorder %s85, %s101
    %p103 = scmp.eq.s32.totalorder %s14, 0
    %p104 = por %p102, %p103
    %p105 = scmp.le.s32.totalorder 1, %s8
    %p106 = scmp.lt.s32.totalorder %s8, 3
    %p107 = pnand %p105, %p106
    %p108 = pneg %p107
    // Predicated region
    $region9: #{freq_split.1} parent=5 // pred_check
      _
    $region10: #{freq_split.1} parent=5 // pred_check_branch
      %110 = sbr.rel (%p107) target = $region12
    $region11: #{freq_split.1} parent=5 // pred_region
      %s111 = ssub.s32 %s8, 1
      // Predicated region
      $region13: #{freq_split.1} parent=11 // pred_check
        %p112 = pneg %p69
      $region14: #{freq_split.1} parent=11 // pred_check_branch
        %114 = sbr.rel (%p112) target = $region16
      $region15: #{freq_split.1} parent=11 // pred_region
        _
      $region16: #{freq_split.1} parent=11 // pred_fallthru
        _
    $region12: #{freq_split.1} parent=5 // pred_fallthru
      _
    %p115 = scmp.lt.s32.totalorder %s8, 2
    // Predicated region
    $region17: #{freq_split.1} parent=5 // pred_check
      %p116 = pneg %p115
    $region18: #{freq_split.1} parent=5 // pred_check_branch
      %118 = sbr.rel (%p116) target = $region20
    $region19: #{freq_split.1} parent=5 // pred_region
      // Predicated region
      $region21: #{freq_split.1} parent=19 // pred_check
        %p119 = pneg %p42
      $region22: #{freq_split.1} parent=19 // pred_check_branch
        %121 = sbr.rel (%p119) target = $region24
      $region23: #{freq_split.1} parent=19 // pred_region
        %s122 = sadd.s32 %s15, %s16
        %p123 = scmp.lt.s32.totalorder %s122, 1
        %s124 = scalar_select %p123, %s122, 1
        %s125 = smul.addr %s124, 2
        %s126 = smul.addr %s125, 2
        %s127 = scalar_lea.vmem %s0, %s126
        %s128 = sadd.s32 %s15, %s16
      $region24: #{freq_split.1} parent=19 // pred_fallthru
        _
    $region20: #{freq_split.1} parent=5 // pred_fallthru
      _
    %p129 = scmp.le.s32.totalorder 1, %s8
    %p130 = scmp.lt.s32.totalorder %s8, 3
    %p131 = pnand %p129, %p130
    %p132 = pneg %p131
    // Predicated region
    $region25: #{freq_split.1} parent=5 // pred_check
      _
    $region26: #{freq_split.1} parent=5 // pred_check_branch
      %134 = sbr.rel (%p131) target = $region28
    $region27: #{freq_split.1} parent=5 // pred_region
      %s135 = ssub.s32 %s8, 1
      %s136 = sadd.s32 %s17, %s18
      %p137 = scmp.lt.s32.totalorder %s136, 1
      %s138 = scalar_select %p137, %s136, 1
      %s139 = smul.addr %s138, 2
      %s140 = smul.addr %s139, 2
      %s141 = scalar_lea.vmem %s0, %s140
      %p142 = pneg %p48
      %p143 = pneg %p45
      %p144 = pneg %p69
      %p145 = pneg %p66
      %p146 = pneg %p97
      %p147 = pneg %p94
      %p148 = scmp.lt.s32.totalorder %s17, 1
      %s149 = scalar_select %p148, %s17, 1
      %p150 = scmp.lt.s32.totalorder %s18, 0
      %s151 = scalar_select %p150, %s18, 0
      %s152 = smul.addr %s149, 5
      %s153 = sadd.s32 %s151, %s152
      %s154 = smul.addr %s153, 8
      %s155 = scalar_lea.vmem %s2, %s154
      %s156 = sadd.s32 %s17, %s18
      %p157 = scmp.lt.s32.totalorder %s156, 1
      %s158 = scalar_select %p157, %s156, 1
      %s159 = smul.addr %s158, 2
      %s160 = smul.addr %s159, 2
      %s161 = scalar_lea.vmem %s0, %s160
      %s162 = sadd.s32 %s17, %s18
      %p163 = scmp.lt.s32.totalorder %s17, 1
      %s164 = scalar_select %p163, %s17, 1
      %p165 = scmp.lt.s32.totalorder %s18, 0
      %s166 = scalar_select %p165, %s18, 0
      %s167 = smul.addr %s164, 5
      %s168 = sadd.s32 %s166, %s167
      %s169 = smul.addr %s168, 8
      %s170 = scalar_lea.vmem %s2, %s169
      %v171 = vld [vmem:[%s161] sm:$0x3]
      %172 = vst [vmem:[#allocation2] sm:$0x3] %v171
      %v173 = vld [vmem:[%s161] sm:$0xf]
      %v176 = vunpack.c.l.s4 1983009808
      %v177 = vunpack.c.0.s8 %v176
      %v178 = vlaneseq
      %v179 = vshrl.u32 %v178, 7
      %v180 = vsub.s32 %v177, %v179
      %v181 = vrot.slane %v173, %v180
      %v182 = vcombine.high %v181, %v181
      %183 = vrot.lane.b32.xlu0 %v181, 127
      %v184 = vpop.permute.xlu0 %183
      %185 = vrot.lane.b32.xlu0 %v182, 127
      %v186 = vpop.permute.xlu0 %185
      %vm187 = vcmask 1039360
      %v188 = vsel %vm187, %v184, %v186
      %190 = vst [vmem:[#allocation2 + $0x2] sm:$0x3] %v188
      %v191 = vld [vmem:[%s161] sm:$0xf]
      %v194 = vunpack.c.l.s4 1983009808
      %v195 = vunpack.c.0.s8 %v194
      %v196 = vlaneseq
      %v197 = vshrl.u32 %v196, 7
      %v198 = vsub.s32 %v195, %v197
      %v199 = vrot.slane %v191, %v198
      %v200 = vcombine.high %v199, %v199
      %201 = vrot.lane.b32.xlu0 %v199, 126
      %v202 = vpop.permute.xlu0 %201
      %203 = vrot.lane.b32.xlu0 %v200, 126
      %v204 = vpop.permute.xlu0 %203
      %vm205 = vcmask 1031168
      %v206 = vsel %vm205, %v202, %v204
      %208 = vst [vmem:[#allocation2 + $0x4] sm:$0x3] %v206
      %v209 = vld [vmem:[%s161] sm:$0xf]
      %v212 = vunpack.c.l.s4 1983009808
      %v213 = vunpack.c.0.s8 %v212
      %v214 = vlaneseq
      %v215 = vshrl.u32 %v214, 7
      %v216 = vsub.s32 %v213, %v215
      %v217 = vrot.slane %v209, %v216
      %v218 = vcombine.high %v217, %v217
      %219 = vrot.lane.b32.xlu0 %v217, 125
      %v220 = vpop.permute.xlu0 %219
      %221 = vrot.lane.b32.xlu0 %v218, 125
      %v222 = vpop.permute.xlu0 %221
      %vm223 = vcmask 1022976
      %v224 = vsel %vm223, %v220, %v222
      %226 = vst [vmem:[#allocation2 + $0x6] sm:$0x3] %v224
      %v227 = vld [vmem:[%s161] sm:$0xf]
      %v230 = vunpack.c.l.s4 1983009808
      %v231 = vunpack.c.0.s8 %v230
      %v232 = vlaneseq
      %v233 = vshrl.u32 %v232, 7
      %v234 = vsub.s32 %v231, %v233
      %v235 = vrot.slane %v227, %v234
      %v236 = vcombine.high %v235, %v235
      %237 = vrot.lane.b32.xlu0 %v235, 124
      %v238 = vpop.permute.xlu0 %237
      %239 = vrot.lane.b32.xlu0 %v236, 124
      %v240 = vpop.permute.xlu0 %239
      %vm241 = vcmask 1014784
      %v242 = vsel %vm241, %v238, %v240
      %244 = vst [vmem:[#allocation2 + $0x8] sm:$0x3] %v242
      %v245 = vld [vmem:[%s161] sm:$0xf]
      %v248 = vunpack.c.l.s4 1983009808
      %v249 = vunpack.c.0.s8 %v248
      %v250 = vlaneseq
      %v251 = vshrl.u32 %v250, 7
      %v252 = vsub.s32 %v249, %v251
      %v253 = vrot.slane %v245, %v252
      %v254 = vcombine.high %v253, %v253
      %255 = vrot.lane.b32.xlu0 %v253, 123
      %v256 = vpop.permute.xlu0 %255
      %257 = vrot.lane.b32.xlu0 %v254, 123
      %v258 = vpop.permute.xlu0 %257
      %vm259 = vcmask 1006592
      %v260 = vsel %vm259, %v256, %v258
      %262 = vst [vmem:[#allocation2 + $0xa] sm:$0x3] %v260
      %v263 = vld [vmem:[%s161] sm:$0xf]
      %v266 = vunpack.c.l.s4 1983009808
      %v267 = vunpack.c.0.s8 %v266
      %v268 = vlaneseq
      %v269 = vshrl.u32 %v268, 7
      %v270 = vsub.s32 %v267, %v269
      %v271 = vrot.slane %v263, %v270
      %v272 = vcombine.high %v271, %v271
      %273 = vrot.lane.b32.xlu0 %v271, 122
      %v274 = vpop.permute.xlu0 %273
      %275 = vrot.lane.b32.xlu0 %v272, 122
      %v276 = vpop.permute.xlu0 %275
      %vm277 = vcmask 998400
      %v278 = vsel %vm277, %v274, %v276
      %280 = vst [vmem:[#allocation2 + $0xc] sm:$0x3] %v278
      %v281 = vld [vmem:[%s161] sm:$0xf]
      %v284 = vunpack.c.l.s4 1983009808
      %v285 = vunpack.c.0.s8 %v284
      %v286 = vlaneseq
      %v287 = vshrl.u32 %v286, 7
      %v288 = vsub.s32 %v285, %v287
      %v289 = vrot.slane %v281, %v288
      %v290 = vcombine.high %v289, %v289
      %291 = vrot.lane.b32.xlu0 %v289, 121
      %v292 = vpop.permute.xlu0 %291
      %293 = vrot.lane.b32.xlu0 %v290, 121
      %v294 = vpop.permute.xlu0 %293
      %vm295 = vcmask 990208
      %v296 = vsel %vm295, %v292, %v294
      %298 = vst [vmem:[#allocation2 + $0xe] sm:$0x3] %v296
      %v299 = vld [vmem:[%s161] sm:$0xf]
      %v302 = vunpack.c.l.s4 1983009808
      %v303 = vunpack.c.0.s8 %v302
      %v304 = vlaneseq
      %v305 = vshrl.u32 %v304, 7
      %v306 = vsub.s32 %v303, %v305
      %v307 = vrot.slane %v299, %v306
      %v308 = vcombine.high %v307, %v307
      %309 = vrot.lane.b32.xlu0 %v307, 120
      %v310 = vpop.permute.xlu0 %309
      %311 = vrot.lane.b32.xlu0 %v308, 120
      %v312 = vpop.permute.xlu0 %311
      %vm313 = vcmask 982016
      %v314 = vsel %vm313, %v310, %v312
      %316 = vst [vmem:[#allocation2 + $0x10] sm:$0x3] %v314
      %v317 = vld [vmem:[%s161] sm:$0xf]
      %v320 = vunpack.c.l.s4 1983009808
      %v321 = vunpack.c.0.s8 %v320
      %v322 = vlaneseq
      %v323 = vshrl.u32 %v322, 7
      %v324 = vsub.s32 %v321, %v323
      %v325 = vrot.slane %v317, %v324
      %v326 = vcombine.high %v325, %v325
      %327 = vrot.lane.b32.xlu0 %v325, 119
      %v328 = vpop.permute.xlu0 %327
      %329 = vrot.lane.b32.xlu0 %v326, 119
      %v330 = vpop.permute.xlu0 %329
      %vm331 = vcmask 973824
      %v332 = vsel %vm331, %v328, %v330
      %334 = vst [vmem:[#allocation2 + $0x12] sm:$0x3] %v332
      %v335 = vld [vmem:[%s161] sm:$0xf]
      %v338 = vunpack.c.l.s4 1983009808
      %v339 = vunpack.c.0.s8 %v338
      %v340 = vlaneseq
      %v341 = vshrl.u32 %v340, 7
      %v342 = vsub.s32 %v339, %v341
      %v343 = vrot.slane %v335, %v342
      %v344 = vcombine.high %v343, %v343
      %345 = vrot.lane.b32.xlu0 %v343, 118
      %v346 = vpop.permute.xlu0 %345
      %347 = vrot.lane.b32.xlu0 %v344, 118
      %v348 = vpop.permute.xlu0 %347
      %vm349 = vcmask 965632
      %v350 = vsel %vm349, %v346, %v348
      %352 = vst [vmem:[#allocation2 + $0x14] sm:$0x3] %v350
      %v353 = vld [vmem:[%s161] sm:$0xf]
      %v356 = vunpack.c.l.s4 1983009808
      %v357 = vunpack.c.0.s8 %v356
      %v358 = vlaneseq
      %v359 = vshrl.u32 %v358, 7
      %v360 = vsub.s32 %v357, %v359
      %v361 = vrot.slane %v353, %v360
      %v362 = vcombine.high %v361, %v361
      %363 = vrot.lane.b32.xlu0 %v361, 117
      %v364 = vpop.permute.xlu0 %363
      %365 = vrot.lane.b32.xlu0 %v362, 117
      %v366 = vpop.permute.xlu0 %365
      %vm367 = vcmask 957440
      %v368 = vsel %vm367, %v364, %v366
      %370 = vst [vmem:[#allocation2 + $0x16] sm:$0x3] %v368
      %v371 = vld [vmem:[%s161] sm:$0xf]
      %v374 = vunpack.c.l.s4 1983009808
      %v375 = vunpack.c.0.s8 %v374
      %v376 = vlaneseq
      %v377 = vshrl.u32 %v376, 7
      %v378 = vsub.s32 %v375, %v377
      %v379 = vrot.slane %v371, %v378
      %v380 = vcombine.high %v379, %v379
      %381 = vrot.lane.b32.xlu0 %v379, 116
      %v382 = vpop.permute.xlu0 %381
      %383 = vrot.lane.b32.xlu0 %v380, 116
      %v384 = vpop.permute.xlu0 %383
      %vm385 = vcmask 949248
      %v386 = vsel %vm385, %v382, %v384
      %388 = vst [vmem:[#allocation2 + $0x18] sm:$0x3] %v386
      %v389 = vld [vmem:[%s161] sm:$0xf]
      %v392 = vunpack.c.l.s4 1983009808
      %v393 = vunpack.c.0.s8 %v392
      %v394 = vlaneseq
      %v395 = vshrl.u32 %v394, 7
      %v396 = vsub.s32 %v393, %v395
      %v397 = vrot.slane %v389, %v396
      %v398 = vcombine.high %v397, %v397
      %399 = vrot.lane.b32.xlu0 %v397, 115
      %v400 = vpop.permute.xlu0 %399
      %401 = vrot.lane.b32.xlu0 %v398, 115
      %v402 = vpop.permute.xlu0 %401
      %vm403 = vcmask 941056
      %v404 = vsel %vm403, %v400, %v402
      %406 = vst [vmem:[#allocation2 + $0x1a] sm:$0x3] %v404
      %v407 = vld [vmem:[%s161] sm:$0xf]
      %v410 = vunpack.c.l.s4 1983009808
      %v411 = vunpack.c.0.s8 %v410
      %v412 = vlaneseq
      %v413 = vshrl.u32 %v412, 7
      %v414 = vsub.s32 %v411, %v413
      %v415 = vrot.slane %v407, %v414
      %v416 = vcombine.high %v415, %v415
      %417 = vrot.lane.b32.xlu0 %v415, 114
      %v418 = vpop.permute.xlu0 %417
      %419 = vrot.lane.b32.xlu0 %v416, 114
      %v420 = vpop.permute.xlu0 %419
      %vm421 = vcmask 932864
      %v422 = vsel %vm421, %v418, %v420
      %424 = vst [vmem:[#allocation2 + $0x1c] sm:$0x3] %v422
      %v425 = vld [vmem:[%s161] sm:$0xf]
      %v428 = vunpack.c.l.s4 1983009808
      %v429 = vunpack.c.0.s8 %v428
      %v430 = vlaneseq
      %v431 = vshrl.u32 %v430, 7
      %v432 = vsub.s32 %v429, %v431
      %v433 = vrot.slane %v425, %v432
      %v434 = vcombine.high %v433, %v433
      %435 = vrot.lane.b32.xlu0 %v433, 113
      %v436 = vpop.permute.xlu0 %435
      %437 = vrot.lane.b32.xlu0 %v434, 113
      %v438 = vpop.permute.xlu0 %437
      %vm439 = vcmask 924672
      %v440 = vsel %vm439, %v436, %v438
      %442 = vst [vmem:[#allocation2 + $0x1e] sm:$0x3] %v440
      %v443 = vld [vmem:[%s1] sm:$0xff]
      %v444 = vld [vmem:[%s1 + $0x8] sm:$0xff]
      %v445 = vld [vmem:[%s1 + $0x10] sm:$0xff]
      %v446 = vld [vmem:[%s1 + $0x18] sm:$0xff]
      %v447 = vld [vmem:[%s1 + $0x20] sm:$0x3]
      %v448 = vld [vmem:[#allocation2] sm:$0xff]
      %v449 = vld [vmem:[#allocation2 + $0x8] sm:$0xff]
      %v450 = vld [vmem:[#allocation2 + $0x10] sm:$0xff]
      %v451 = vld [vmem:[#allocation2 + $0x18] sm:$0xff]
      %vm452 = vcmask 261120
      %v454 = vsel %vm452, %v443, 0
      %v457 = vsel %vm452, %v444, 0
      %v460 = vsel %vm452, %v445, 0
      %v463 = vsel %vm452, %v446, 0
      %v466 = vsel %vm452, %v447, 0
      %468 = vmatprep.subr.mxu0 0.0
      %469 = vmatpush1.msra.mxu0 %v448
      %470 = vmatprep.subr.mxu0 0.0
      %471 = vmatpush1.msra.mxu0 %v449
      %472 = vmatprep.subr.mxu0 0.0
      %473 = vmatpush1.msra.mxu0 %v450
      %474 = vmatprep.subr.mxu0 0.0
      %475 = vmatpush1.msra.mxu0 %v451
      %476 = vmatprep.subr.mxu0 0.0
      %477 = vmatpush1.msra.mxu0 0.0
      %478 = vmatprep.subr.mxu0 0.0
      %479 = vmatpush1.msra.mxu0 0.0
      %480 = vmatprep.subr.mxu0 0.0
      %481 = vmatpush1.msra.mxu0 0.0
      %482 = vmatprep.subr.mxu0 0.0
      %483 = vmatpush1.msra.mxu0 0.0
      %484 = vmatprep.subr.mxu0 0.0
      %485 = vmatpush1.msra.mxu0 0.0
      %486 = vmatprep.subr.mxu0 0.0
      %487 = vmatpush1.msra.mxu0 0.0
      %488 = vmatprep.subr.mxu0 0.0
      %489 = vmatpush1.msra.mxu0 0.0
      %490 = vmatprep.subr.mxu0 0.0
      %491 = vmatpush1.msra.mxu0 0.0
      %492 = vmatprep.subr.mxu0 0.0
      %493 = vmatpush1.msra.mxu0 0.0
      %494 = vmatprep.subr.mxu0 0.0
      %495 = vmatpush1.msra.mxu0 0.0
      %496 = vmatprep.subr.mxu0 0.0
      %497 = vmatpush1.msra.mxu0 0.0
      %498 = vmatprep.subr.mxu0 0.0
      %499 = vmatpush1.msra.mxu0 0.0
      %500 = vmatprep.subr.mxu0 0.0
      %501 = vmatpush1.msra.mxu0 0.0
      %502 = vmatprep.subr.mxu0 0.0
      %503 = vmatpush1.msra.mxu0 0.0
      %504 = vmatprep.subr.mxu0 0.0
      %505 = vmatpush1.msra.mxu0 0.0
      %506 = vmatprep.subr.mxu0 0.0
      %507 = vmatpush1.msra.mxu0 0.0
      %508 = vmatprep.subr.mxu0 0.0
      %509 = vmatpush1.msra.mxu0 0.0
      %510 = vmatprep.subr.mxu0 0.0
      %511 = vmatpush1.msra.mxu0 0.0
      %512 = vmatprep.subr.mxu0 0.0
      %513 = vmatpush1.msra.mxu0 0.0
      %514 = vmatprep.subr.mxu0 0.0
      %515 = vmatpush1.msra.mxu0 0.0
      %516 = vmatprep.subr.mxu0 0.0
      %517 = vmatpush1.msra.mxu0 0.0
      %518 = vmatprep.subr.mxu0 0.0
      %519 = vmatpush1.msra.mxu0 0.0
      %520 = vmatprep.subr.mxu0 0.0
      %521 = vmatpush1.msra.mxu0 0.0
      %522 = vmatprep.subr.mxu0 0.0
      %523 = vmatpush1.msra.mxu0 0.0
      %524 = vmatprep.subr.mxu0 0.0
      %525 = vmatpush1.msra.mxu0 0.0
      %526 = vmatprep.subr.mxu0 0.0
      %527 = vmatpush1.msra.mxu0 0.0
      %528 = vmatprep.subr.mxu0 0.0
      %529 = vmatpush1.msra.mxu0 0.0
      %530 = vmatprep.subr.mxu0 0.0
      %531 = vmatpush1.msra.mxu0 0.0
      %532 = vmatprep.mubr.f32.mxu0 0.0
      %533 = vmatmul.mubr.f32.gmra.mrb[0].mxu0 %v454
      %v534 = vpop.f32.mrb[0].mxu0
      %v535 = vadd.f32 0.0, %v534
      %v536 = vpop.f32.mrb[0].mxu0
      %537 = vmatprep.mubr.f32.mxu0 0.0
      %538 = vmatmul.mubr.f32.gmra.mrb[0].mxu0 %v457
      %v539 = vpop.f32.mrb[0].mxu0
      %v540 = vadd.f32 0.0, %v539
      %v541 = vpop.f32.mrb[0].mxu0
      %542 = vmatprep.mubr.f32.mxu0 0.0
      %543 = vmatmul.mubr.f32.gmra.mrb[0].mxu0 %v460
      %v544 = vpop.f32.mrb[0].mxu0
      %v545 = vadd.f32 0.0, %v544
      %v546 = vpop.f32.mrb[0].mxu0
      %547 = vmatprep.mubr.f32.mxu0 0.0
      %548 = vmatmul.mubr.f32.gmra.mrb[0].mxu0 %v463
      %v549 = vpop.f32.mrb[0].mxu0
      %v550 = vadd.f32 0.0, %v549
      %v551 = vpop.f32.mrb[0].mxu0
      %552 = vmatprep.mubr.f32.mxu0 0.0
      %553 = vmatmul.mubr.f32.gmra.mrb[0].mxu0 %v466
      %v554 = vpop.f32.mrb[0].mxu0
      %v555 = vadd.f32 0.0, %v554
      %v556 = vpop.f32.mrb[0].mxu0
      %557 = vdwg.mxu0
      %558 = vst [vmem:[%s170] sm:$0xff] %v535
      %559 = vst [vmem:[%s170 + $0x8] sm:$0xff] %v540
      %560 = vst [vmem:[%s170 + $0x10] sm:$0xff] %v545
      %561 = vst [vmem:[%s170 + $0x18] sm:$0xff] %v550
      %562 = vst [vmem:[%s170 + $0x20] sm:$0x3] %v555
      %p563 = scmp.lt.s32.totalorder %s17, 1
      %s564 = scalar_select %p563, %s17, 1
      %p565 = scmp.lt.s32.totalorder %s18, 0
      %s566 = scalar_select %p565, %s18, 0
      %s567 = smul.addr %s564, 5
      %s568 = sadd.s32 %s566, %s567
      %s569 = smul.addr %s568, 8
      %s570 = scalar_lea.vmem %s2, %s569
      // Predicated region
      $region29: #{freq_split.1} parent=27 // pred_check
        %p571 = pneg %p94
      $region30: #{freq_split.1} parent=27 // pred_check_branch
        %573 = sbr.rel (%p571) target = $region32
      $region31: #{freq_split.1} parent=27 // pred_region
        _
      $region32: #{freq_split.1} parent=27 // pred_fallthru
        _
    $region28: #{freq_split.1} parent=5 // pred_fallthru
      _
    %p574 = scmp.le.s32.totalorder 2, %s8
    // Predicated region
    $region33: #{freq_split.1} parent=5 // pred_check
      %p575 = pneg %p574
    $region34: #{freq_split.1} parent=5 // pred_check_branch
      %577 = sbr.rel (%p575) target = $region36
    $region35: #{freq_split.1} parent=5 // pred_region
      %s578 = ssub.s32 %s8, 2
      // Predicated region
      $region37: #{freq_split.1} parent=35 // pred_check
        %p579 = pneg %p100
      $region38: #{freq_split.1} parent=35 // pred_check_branch
        %581 = sbr.rel (%p579) target = $region40
      $region39: #{freq_split.1} parent=35 // pred_region
        %p582 = scmp.lt.s32.totalorder %s19, 1
        %s583 = scalar_select %p582, %s19, 1
        %p584 = scmp.lt.s32.totalorder %s20, 0
        %s585 = scalar_select %p584, %s20, 0
        %s586 = smul.addr %s583, 5
        %s587 = sadd.s32 %s585, %s586
        %s588 = smul.addr %s587, 8
        %s589 = scalar_lea.vmem %s2, %s588
      $region40: #{freq_split.1} parent=35 // pred_fallthru
        _
    $region36: #{freq_split.1} parent=5 // pred_fallthru
      _
  $region6: #{freq_split.1} parent=0 // loop_footer
    %s12 = sadd.s32 1, %s8
  $region7: #{freq_split.1} parent=0 // loop_footer_branch
    %7 = sbr.rel target = $region3
  $region8: #{freq_split.1} parent=0 // loop_exit
    _

</llo_original>
